<compile_context>
chip_gen: v6e
topology: v6e:2x2x1
jax: 0.10.0
libtpu: 0.0.40
codegen_flags: <defaults>
</compile_context>

<pallas_src>
import functools

import jax
import jax.numpy as jnp
from jax.experimental import pallas as pl
from jax.experimental.pallas import tpu as pltpu


def _round_up(x: int, m: int) -> int:
    return ((x + m - 1) // m) * m


def _mxu_alignment() -> int:
    """256 for 256x256-MXU chips (v6e/v7x), 128 for older generations."""
    try:
        kind = jax.devices()[0].device_kind.lower()
    except Exception:
        return 128
    for tag in ("v2", "v3", "v4", "v5"):
        if tag in kind:
            return 128
    return 256


# ---------------------------------------------------------------------------
# Kernel 1: reparameterized weight sample (K-gridded), bf16 output.
# ---------------------------------------------------------------------------
def sample_weights_kernel(mean_ref, logvar_ref, eps_ref, w_ref):
    # f32 elementwise math (exp on the EUP); single cast to bf16 for the MXU
    # consumer.  n_pad is a multiple of 128 -> lane-dense, unmasked stores.
    w = mean_ref[...] + jnp.exp(0.5 * logvar_ref[...]) * eps_ref[...]
    w_ref[...] = w.astype(jnp.bfloat16)


# ---------------------------------------------------------------------------
# Kernel 2: batch-tiled matmul against the resident sampled weight.
# ---------------------------------------------------------------------------
def bayesian_matmul_kernel(x_ref, w_ref, o_ref):
    # bf16 operands (pre-cast in the wrapper) feed the MXU at full rate;
    # accumulate in f32.
    o_ref[...] = jnp.dot(x_ref[...], w_ref[...], preferred_element_type=jnp.float32)


# ---------------------------------------------------------------------------
# Kernel 3 (fused, single batch tile): sample + matmul in one call — avoids the
# w_sample HBM round trip and an extra launch for small-batch shapes.
# ---------------------------------------------------------------------------
def fused_sample_matmul_kernel(x_ref, mean_ref, logvar_ref, eps_ref, o_ref):
    w = (mean_ref[...] + jnp.exp(0.5 * logvar_ref[...]) * eps_ref[...]).astype(jnp.bfloat16)
    o_ref[...] = jnp.dot(x_ref[...], w, preferred_element_type=jnp.float32)


@functools.partial(jax.jit, static_argnames=("block_m",))
def bayesian_lr_forward(x, weights_mean, weights_logvar, eps, *, block_m: int = 512):
    """x: (N, D_in); weights_*/eps: (D_in, D_out) -> (N, D_out) float32."""
    n, d_in = x.shape
    d_in_w, d_out = weights_mean.shape
    assert d_in == d_in_w and eps.shape == weights_mean.shape

    # MXU / lane alignment: 256 on v6e/v7x (full 256x256 systolic occupancy),
    # 128 elsewhere.  Padded entries contribute exactly zero (see below).
    align = _mxu_alignment()
    k_pad = _round_up(d_in, align)
    n_pad = _round_up(d_out, align)

    # Batch tile: 512 default (mem-bound regime reaches ~85% HBM roofline),
    # 8-aligned for the sublane rule.
    tm = block_m if n >= block_m else _round_up(max(n, 1), 8)
    m_pad = _round_up(n, tm)

    # x is the streamed operand: pad + cast to bf16 once in the wrapper.
    if (m_pad, k_pad) == (n, d_in):
        x_p = x.astype(jnp.bfloat16)
    else:
        x_p = jnp.zeros((m_pad, k_pad), jnp.bfloat16).at[:n, :d_in].set(
            x.astype(jnp.bfloat16))

    # Weight-side padding only when actually needed.  Padded mean=0 and eps=0
    # => sampled padded weights are exactly 0, so padding never changes out.
    if (k_pad, n_pad) == (d_in, d_out):
        mean_p, logvar_p, eps_p = weights_mean, weights_logvar, eps
    else:
        mean_p = jnp.zeros((k_pad, n_pad), jnp.float32).at[:d_in, :d_out].set(weights_mean)
        logvar_p = jnp.zeros((k_pad, n_pad), jnp.float32).at[:d_in, :d_out].set(weights_logvar)
        eps_p = jnp.zeros((k_pad, n_pad), jnp.float32).at[:d_in, :d_out].set(eps)

    # ---- Fused single-tile path (small batch, weight-dominated shapes). ----
    fused_vmem = (3 * 4 + 2) * k_pad * n_pad + tm * k_pad * 2 + 2 * tm * n_pad * 4
    if m_pad == tm and fused_vmem <= (24 << 20):
        out_p = pl.pallas_call(
            fused_sample_matmul_kernel,
            out_shape=jax.ShapeDtypeStruct((m_pad, n_pad), jnp.float32),
            compiler_params=pltpu.CompilerParams(
                vmem_limit_bytes=int(min(max(fused_vmem + (4 << 20), 32 << 20), 100 << 20)),
            ),
        )(x_p, mean_p, logvar_p, eps_p)
        return out_p[:n, :d_out]

    # ---- Two-call path. ----
    # 1) K-gridded weight sampling (pipelined DMA, purely HBM-bound).  Pick tk
    #    so one block of (3x f32 in + bf16 out) is ~2 MiB, capped at 512 rows.
    bytes_per_row = (3 * 4 + 2) * n_pad
    tk = max(8, min(k_pad, 512, ((2 << 20) // bytes_per_row) // 8 * 8))
    w_sample = pl.pallas_call(
        sample_weights_kernel,
        out_shape=jax.ShapeDtypeStruct((k_pad, n_pad), jnp.bfloat16),
        grid=(pl.cdiv(k_pad, tk),),
        in_specs=[
            pl.BlockSpec((tk, n_pad), lambda i: (i, 0)),
            pl.BlockSpec((tk, n_pad), lambda i: (i, 0)),
            pl.BlockSpec((tk, n_pad), lambda i: (i, 0)),
        ],
        out_specs=pl.BlockSpec((tk, n_pad), lambda i: (i, 0)),
        compiler_params=pltpu.CompilerParams(
            dimension_semantics=("parallel",),
        ),
    )(mean_p, logvar_p, eps_p)

    # 2) Batch-tiled matmul.  Constant weight index_map => weight stays
    #    resident in VMEM across batch tiles; "parallel" batch axis => sharded
    #    across v7x's two TensorCores (no-op on v5e/v6e).
    mm_vmem = 2 * (tm * k_pad * 2) + 2 * (k_pad * n_pad * 2) + 2 * (tm * n_pad * 4)
    out_p = pl.pallas_call(
        bayesian_matmul_kernel,
        out_shape=jax.ShapeDtypeStruct((m_pad, n_pad), jnp.float32),
        grid=(m_pad // tm,),
        in_specs=[
            pl.BlockSpec((tm, k_pad), lambda i: (i, 0)),      # streamed bf16 x tiles
            pl.BlockSpec((k_pad, n_pad), lambda i: (0, 0)),   # resident bf16 weights
        ],
        out_specs=pl.BlockSpec((tm, n_pad), lambda i: (i, 0)),
        compiler_params=pltpu.CompilerParams(
            dimension_semantics=("parallel",),
            vmem_limit_bytes=int(min(max(mm_vmem + (4 << 20), 32 << 20), 100 << 20)),
        ),
    )(x_p, w_sample)
    # TODO(synk): once the resident bf16 weight (k_pad*n_pad*2B) exceeds ~24 MiB
    # (v7x has only 64 MiB physical VMEM), add a trailing "arbitrary" K grid
    # axis with an f32 VMEM accumulator and single-buffer the weight block.

    return out_p[:n, :d_out]


if __name__ == "__main__":
    key = jax.random.PRNGKey(0)
    k_x, k_eps, k_x2, k_eps2 = jax.random.split(key, 4)

    # --- Test 1: module-consistent small shapes (fused single-tile path). ---
    batch, input_dim, output_dim = 8, 32, 16
    x = jax.random.normal(k_x, (batch, input_dim), dtype=jnp.float32)
    # nn.Parameter(torch.zeros(...)) equivalents.
    weights_mean = jnp.zeros((input_dim, output_dim), dtype=jnp.float32)
    weights_logvar = jnp.zeros((input_dim, output_dim), dtype=jnp.float32)
    # Gaussian noise for the reparameterization trick (randn_like equivalent).
    eps = jax.random.normal(k_eps, (input_dim, output_dim), dtype=jnp.float32)

    out = bayesian_lr_forward(x, weights_mean, weights_logvar, eps)
    jax.block_until_ready(out)

    w_ref = weights_mean + jnp.exp(0.5 * weights_logvar) * eps
    ref = x @ w_ref
    assert out.shape == (batch, output_dim)
    assert jnp.allclose(out, ref, atol=1e-1, rtol=2e-2), float(
        jnp.max(jnp.abs(out - ref)))

    # --- Test 2: multi-tile path (gridded sampling + streamed batch grid,
    #     already lane-aligned so the no-padding fast path is exercised). ---
    batch2, in_dim2, out_dim2 = 384, 256, 256
    x2 = jax.random.normal(k_x2, (batch2, in_dim2), dtype=jnp.float32)
    mean2 = jnp.zeros((in_dim2, out_dim2), dtype=jnp.float32)
    logvar2 = jnp.zeros((in_dim2, out_dim2), dtype=jnp.float32)
    eps2 = jax.random.normal(k_eps2, (in_dim2, out_dim2), dtype=jnp.float32)

    out2 = bayesian_lr_forward(x2, mean2, logvar2, eps2, block_m=128)
    jax.block_until_ready(out2)

    ref2 = x2 @ (mean2 + jnp.exp(0.5 * logvar2) * eps2)
    assert out2.shape == (batch2, out_dim2)
    max_err = float(jnp.max(jnp.abs(out2 - ref2)))
    scale = float(jnp.max(jnp.abs(ref2))) + 1e-6
    assert max_err / scale < 3e-2, (max_err, scale)

    print("KERNEL_OK")
</pallas_src>

<mosaic_0001>
module attributes {stable_mosaic.version = 11 : i64} {
  func.func @fused_sample_matmul_kernel(%arg0: memref<8x256xbf16, #tpu.memory_space<vmem>>, %arg1: memref<256x256xf32, #tpu.memory_space<vmem>>, %arg2: memref<256x256xf32, #tpu.memory_space<vmem>>, %arg3: memref<256x256xf32, #tpu.memory_space<vmem>>, %arg4: memref<8x256xf32, #tpu.memory_space<vmem>>) attributes {dimension_semantics = [], scalar_prefetch = 0 : i64, scratch_operands = 0 : i64, tpu.core_type = #tpu.core_type<tc>} {
    %c0 = arith.constant 0 : index
    %c0_0 = arith.constant 0 : index
    %0 = vector.load %arg1[%c0, %c0_0] : memref<256x256xf32, #tpu.memory_space<vmem>>, vector<256x256xf32>
    %c0_1 = arith.constant 0 : index
    %c0_2 = arith.constant 0 : index
    %1 = vector.load %arg2[%c0_1, %c0_2] : memref<256x256xf32, #tpu.memory_space<vmem>>, vector<256x256xf32>
    %cst = arith.constant 5.000000e-01 : f32
    %2 = vector.broadcast %cst : f32 to vector<256x256xf32>
    %3 = arith.mulf %2, %1 : vector<256x256xf32>
    %4 = math.exp %3 : vector<256x256xf32>
    %c0_3 = arith.constant 0 : index
    %c0_4 = arith.constant 0 : index
    %5 = vector.load %arg3[%c0_3, %c0_4] : memref<256x256xf32, #tpu.memory_space<vmem>>, vector<256x256xf32>
    %6 = arith.mulf %4, %5 : vector<256x256xf32>
    %7 = arith.addf %0, %6 : vector<256x256xf32>
    %8 = arith.truncf %7 : vector<256x256xf32> to vector<256x256xbf16>
    %c0_5 = arith.constant 0 : index
    %c0_6 = arith.constant 0 : index
    %9 = vector.load %arg0[%c0_5, %c0_6] : memref<8x256xbf16, #tpu.memory_space<vmem>>, vector<8x256xbf16>
    %cst_7 = arith.constant dense<0.000000e+00> : vector<8x256xf32>
    %10 = tpu.matmul %9, %8, %cst_7 {dimension_numbers = #tpu.dot_dimension_numbers<[1], [0], [0], [1], [0, 0, 1, 1], [], []>} : vector<8x256xbf16>, vector<256x256xbf16>, vector<8x256xf32> -> vector<8x256xf32>
    %c0_8 = arith.constant 0 : index
    %c0_9 = arith.constant 0 : index
    %11 = vector.load %arg4[%c0_8, %c0_9] : memref<8x256xf32, #tpu.memory_space<vmem>>, vector<8x256xf32>
    tpu.vector_store %arg4[%c0_8, %c0_9], %10 {strides = array<i32>} : memref<8x256xf32, #tpu.memory_space<vmem>>, vector<8x256xf32>,
    return
  }
}

</mosaic_0001>

<llo_original>
// kernel: bayesian_lr_forward.1
$region0: #{bayesian_lr_forward.1}
  #allocation0 [shape = 'u32[]', space=smem, size = 0x4, offset = 0x4, fixed_abs, tag = 'smem constant byte address 0x4 - core index']
  #allocation1 [shape = 'u32[144,128]{1,0:T(1,128)}', space=vmem, size = 0x12000, scoped, tag = 'internal scratch']
  %s0 = inlined_call_operand.vmem [shape: bf16[8,256], index: 0, kind: input, shape index: {}]
  %s1 = inlined_call_operand.vmem [shape: f32[256,256], index: 1, kind: input, shape index: {}]
  %s2 = inlined_call_operand.vmem [shape: f32[256,256], index: 2, kind: input, shape index: {}]
  %s3 = inlined_call_operand.vmem [shape: f32[256,256], index: 3, kind: input, shape index: {}]
  %s4 = inlined_call_operand.vmem [shape: f32[8,256], index: 4, kind: output, shape index: {}]
  %s5 = sld [smem:[#allocation0]]
  $region26: #{bayesian_lr_forward.1} parent=0
    _
  %s7 = ssub.s32 1, %s5
  %s8 = scalar_select 0, %s7, %s5
  // Predicated region
  $region2: #{bayesian_lr_forward.1} parent=0 // pred_check
    _
  $region3: #{bayesian_lr_forward.1} parent=0 // pred_check_branch
    %10 = sbr.rel (0) target = $region5
  $region4: #{bayesian_lr_forward.1} parent=0 // pred_region
    _
  $region5: #{bayesian_lr_forward.1} parent=0 // pred_fallthru
    _
  // Predicated region
  $region6: #{bayesian_lr_forward.1} parent=0 // pred_check
    _
  $region7: #{bayesian_lr_forward.1} parent=0 // pred_check_branch
    %12 = sbr.rel (0) target = $region9
  $region8: #{bayesian_lr_forward.1} parent=0 // pred_region
    _
  $region9: #{bayesian_lr_forward.1} parent=0 // pred_fallthru
    _
  // Predicated region
  $region10: #{bayesian_lr_forward.1} parent=0 // pred_check
    _
  $region11: #{bayesian_lr_forward.1} parent=0 // pred_check_branch
    %14 = sbr.rel (0) target = $region13
  $region12: #{bayesian_lr_forward.1} parent=0 // pred_region
    _
  $region13: #{bayesian_lr_forward.1} parent=0 // pred_fallthru
    _
  // Predicated region
  $region14: #{bayesian_lr_forward.1} parent=0 // pred_check
    _
  $region15: #{bayesian_lr_forward.1} parent=0 // pred_check_branch
    %16 = sbr.rel (0) target = $region17
  $region16: #{bayesian_lr_forward.1} parent=0 // pred_region
    _
  $region17: #{bayesian_lr_forward.1} parent=0 // pred_fallthru
    _
  %v17 = vld [vmem:[%s1] sm:$0xff]
  %v18 = vld [vmem:[%s1 + $0x8] sm:$0xff]
  %v19 = vld [vmem:[%s1 + $0x10] sm:$0xff]
  %v20 = vld [vmem:[%s1 + $0x18] sm:$0xff]
  %v21 = vld [vmem:[%s1 + $0x20] sm:$0xff]
  %v22 = vld [vmem:[%s1 + $0x28] sm:$0xff]
  %v23 = vld [vmem:[%s1 + $0x30] sm:$0xff]
  %v24 = vld [vmem:[%s1 + $0x38] sm:$0xff]
  %v25 = vld [vmem:[%s1 + $0x40] sm:$0xff]
  %v26 = vld [vmem:[%s1 + $0x48] sm:$0xff]
  %v27 = vld [vmem:[%s1 + $0x50] sm:$0xff]
  %v28 = vld [vmem:[%s1 + $0x58] sm:$0xff]
  %v29 = vld [vmem:[%s1 + $0x60] sm:$0xff]
  %v30 = vld [vmem:[%s1 + $0x68] sm:$0xff]
  %v31 = vld [vmem:[%s1 + $0x70] sm:$0xff]
  %v32 = vld [vmem:[%s1 + $0x78] sm:$0xff]
  %v33 = vld [vmem:[%s1 + $0x80] sm:$0xff]
  %v34 = vld [vmem:[%s1 + $0x88] sm:$0xff]
  %v35 = vld [vmem:[%s1 + $0x90] sm:$0xff]
  %v36 = vld [vmem:[%s1 + $0x98] sm:$0xff]
  %v37 = vld [vmem:[%s1 + $0xa0] sm:$0xff]
  %v38 = vld [vmem:[%s1 + $0xa8] sm:$0xff]
  %v39 = vld [vmem:[%s1 + $0xb0] sm:$0xff]
  %v40 = vld [vmem:[%s1 + $0xb8] sm:$0xff]
  %v41 = vld [vmem:[%s1 + $0xc0] sm:$0xff]
  %v42 = vld [vmem:[%s1 + $0xc8] sm:$0xff]
  %v43 = vld [vmem:[%s1 + $0xd0] sm:$0xff]
  %v44 = vld [vmem:[%s1 + $0xd8] sm:$0xff]
  %v45 = vld [vmem:[%s1 + $0xe0] sm:$0xff]
  %v46 = vld [vmem:[%s1 + $0xe8] sm:$0xff]
  %v47 = vld [vmem:[%s1 + $0xf0] sm:$0xff]
  %v48 = vld [vmem:[%s1 + $0xf8] sm:$0xff]
  %v49 = vld [vmem:[%s1 + $0x100] sm:$0xff]
  %v50 = vld [vmem:[%s1 + $0x108] sm:$0xff]
  %v51 = vld [vmem:[%s1 + $0x110] sm:$0xff]
  %v52 = vld [vmem:[%s1 + $0x118] sm:$0xff]
  %v53 = vld [vmem:[%s1 + $0x120] sm:$0xff]
  %v54 = vld [vmem:[%s1 + $0x128] sm:$0xff]
  %v55 = vld [vmem:[%s1 + $0x130] sm:$0xff]
  %v56 = vld [vmem:[%s1 + $0x138] sm:$0xff]
  %v57 = vld [vmem:[%s1 + $0x140] sm:$0xff]
  %v58 = vld [vmem:[%s1 + $0x148] sm:$0xff]
  %v59 = vld [vmem:[%s1 + $0x150] sm:$0xff]
  %v60 = vld [vmem:[%s1 + $0x158] sm:$0xff]
  %v61 = vld [vmem:[%s1 + $0x160] sm:$0xff]
  %v62 = vld [vmem:[%s1 + $0x168] sm:$0xff]
  %v63 = vld [vmem:[%s1 + $0x170] sm:$0xff]
  %v64 = vld [vmem:[%s1 + $0x178] sm:$0xff]
  %v65 = vld [vmem:[%s1 + $0x180] sm:$0xff]
  %v66 = vld [vmem:[%s1 + $0x188] sm:$0xff]
  %v67 = vld [vmem:[%s1 + $0x190] sm:$0xff]
  %v68 = vld [vmem:[%s1 + $0x198] sm:$0xff]
  %v69 = vld [vmem:[%s1 + $0x1a0] sm:$0xff]
  %v70 = vld [vmem:[%s1 + $0x1a8] sm:$0xff]
  %v71 = vld [vmem:[%s1 + $0x1b0] sm:$0xff]
  %v72 = vld [vmem:[%s1 + $0x1b8] sm:$0xff]
  %v73 = vld [vmem:[%s1 + $0x1c0] sm:$0xff]
  %v74 = vld [vmem:[%s1 + $0x1c8] sm:$0xff]
  %v75 = vld [vmem:[%s1 + $0x1d0] sm:$0xff]
  %v76 = vld [vmem:[%s1 + $0x1d8] sm:$0xff]
  %v77 = vld [vmem:[%s1 + $0x1e0] sm:$0xff]
  %v78 = vld [vmem:[%s1 + $0x1e8] sm:$0xff]
  %v79 = vld [vmem:[%s1 + $0x1f0] sm:$0xff]
  %v80 = vld [vmem:[%s1 + $0x1f8] sm:$0xff]
  %v81 = vld [vmem:[%s2] sm:$0xff]
  %v82 = vld [vmem:[%s2 + $0x8] sm:$0xff]
  %v83 = vld [vmem:[%s2 + $0x10] sm:$0xff]
  %v84 = vld [vmem:[%s2 + $0x18] sm:$0xff]
  %v85 = vld [vmem:[%s2 + $0x20] sm:$0xff]
  %v86 = vld [vmem:[%s2 + $0x28] sm:$0xff]
  %v87 = vld [vmem:[%s2 + $0x30] sm:$0xff]
  %v88 = vld [vmem:[%s2 + $0x38] sm:$0xff]
  %v89 = vld [vmem:[%s2 + $0x40] sm:$0xff]
  %v90 = vld [vmem:[%s2 + $0x48] sm:$0xff]
  %v91 = vld [vmem:[%s2 + $0x50] sm:$0xff]
  %v92 = vld [vmem:[%s2 + $0x58] sm:$0xff]
  %v93 = vld [vmem:[%s2 + $0x60] sm:$0xff]
  %v94 = vld [vmem:[%s2 + $0x68] sm:$0xff]
  %v95 = vld [vmem:[%s2 + $0x70] sm:$0xff]
  %v96 = vld [vmem:[%s2 + $0x78] sm:$0xff]
  %v97 = vld [vmem:[%s2 + $0x80] sm:$0xff]
  %v98 = vld [vmem:[%s2 + $0x88] sm:$0xff]
  %v99 = vld [vmem:[%s2 + $0x90] sm:$0xff]
  %v100 = vld [vmem:[%s2 + $0x98] sm:$0xff]
  %v101 = vld [vmem:[%s2 + $0xa0] sm:$0xff]
  %v102 = vld [vmem:[%s2 + $0xa8] sm:$0xff]
  %v103 = vld [vmem:[%s2 + $0xb0] sm:$0xff]
  %v104 = vld [vmem:[%s2 + $0xb8] sm:$0xff]
  %v105 = vld [vmem:[%s2 + $0xc0] sm:$0xff]
  %v106 = vld [vmem:[%s2 + $0xc8] sm:$0xff]
  %v107 = vld [vmem:[%s2 + $0xd0] sm:$0xff]
  %v108 = vld [vmem:[%s2 + $0xd8] sm:$0xff]
  %v109 = vld [vmem:[%s2 + $0xe0] sm:$0xff]
  %v110 = vld [vmem:[%s2 + $0xe8] sm:$0xff]
  %v111 = vld [vmem:[%s2 + $0xf0] sm:$0xff]
  %v112 = vld [vmem:[%s2 + $0xf8] sm:$0xff]
  %v113 = vld [vmem:[%s2 + $0x100] sm:$0xff]
  %v114 = vld [vmem:[%s2 + $0x108] sm:$0xff]
  %v115 = vld [vmem:[%s2 + $0x110] sm:$0xff]
  %v116 = vld [vmem:[%s2 + $0x118] sm:$0xff]
  %v117 = vld [vmem:[%s2 + $0x120] sm:$0xff]
  %v118 = vld [vmem:[%s2 + $0x128] sm:$0xff]
  %v119 = vld [vmem:[%s2 + $0x130] sm:$0xff]
  %v120 = vld [vmem:[%s2 + $0x138] sm:$0xff]
  %v121 = vld [vmem:[%s2 + $0x140] sm:$0xff]
  %v122 = vld [vmem:[%s2 + $0x148] sm:$0xff]
  %v123 = vld [vmem:[%s2 + $0x150] sm:$0xff]
  %v124 = vld [vmem:[%s2 + $0x158] sm:$0xff]
  %v125 = vld [vmem:[%s2 + $0x160] sm:$0xff]
  %v126 = vld [vmem:[%s2 + $0x168] sm:$0xff]
  %v127 = vld [vmem:[%s2 + $0x170] sm:$0xff]
  %v128 = vld [vmem:[%s2 + $0x178] sm:$0xff]
  %v129 = vld [vmem:[%s2 + $0x180] sm:$0xff]
  %v130 = vld [vmem:[%s2 + $0x188] sm:$0xff]
  %v131 = vld [vmem:[%s2 + $0x190] sm:$0xff]
  %v132 = vld [vmem:[%s2 + $0x198] sm:$0xff]
  %v133 = vld [vmem:[%s2 + $0x1a0] sm:$0xff]
  %v134 = vld [vmem:[%s2 + $0x1a8] sm:$0xff]
  %v135 = vld [vmem:[%s2 + $0x1b0] sm:$0xff]
  %v136 = vld [vmem:[%s2 + $0x1b8] sm:$0xff]
  %v137 = vld [vmem:[%s2 + $0x1c0] sm:$0xff]
  %v138 = vld [vmem:[%s2 + $0x1c8] sm:$0xff]
  %v139 = vld [vmem:[%s2 + $0x1d0] sm:$0xff]
  %v140 = vld [vmem:[%s2 + $0x1d8] sm:$0xff]
  %v141 = vld [vmem:[%s2 + $0x1e0] sm:$0xff]
  %v142 = vld [vmem:[%s2 + $0x1e8] sm:$0xff]
  %v143 = vld [vmem:[%s2 + $0x1f0] sm:$0xff]
  %v144 = vld [vmem:[%s2 + $0x1f8] sm:$0xff]
  %v145 = vmul.f32 %v81, 0.5
  %v146 = vmul.f32 %v82, 0.5
  %v147 = vmul.f32 %v83, 0.5
  %v148 = vmul.f32 %v84, 0.5
  %v149 = vmul.f32 %v85, 0.5
  %v150 = vmul.f32 %v86, 0.5
  %v151 = vmul.f32 %v87, 0.5
  %v152 = vmul.f32 %v88, 0.5
  %v153 = vmul.f32 %v89, 0.5
  %v154 = vmul.f32 %v90, 0.5
  %v155 = vmul.f32 %v91, 0.5
  %v156 = vmul.f32 %v92, 0.5
  %v157 = vmul.f32 %v93, 0.5
  %v158 = vmul.f32 %v94, 0.5
  %v159 = vmul.f32 %v95, 0.5
  %v160 = vmul.f32 %v96, 0.5
  %v161 = vmul.f32 %v97, 0.5
  %v162 = vmul.f32 %v98, 0.5
  %v163 = vmul.f32 %v99, 0.5
  %v164 = vmul.f32 %v100, 0.5
  %v165 = vmul.f32 %v101, 0.5
  %v166 = vmul.f32 %v102, 0.5
  %v167 = vmul.f32 %v103, 0.5
  %v168 = vmul.f32 %v104, 0.5
  %v169 = vmul.f32 %v105, 0.5
  %v170 = vmul.f32 %v106, 0.5
  %v171 = vmul.f32 %v107, 0.5
  %v172 = vmul.f32 %v108, 0.5
  %v173 = vmul.f32 %v109, 0.5
  %v174 = vmul.f32 %v110, 0.5
  %v175 = vmul.f32 %v111, 0.5
  %v176 = vmul.f32 %v112, 0.5
  %v177 = vmul.f32 %v113, 0.5
  %v178 = vmul.f32 %v114, 0.5
  %v179 = vmul.f32 %v115, 0.5
  %v180 = vmul.f32 %v116, 0.5
  %v181 = vmul.f32 %v117, 0.5
  %v182 = vmul.f32 %v118, 0.5
  %v183 = vmul.f32 %v119, 0.5
  %v184 = vmul.f32 %v120, 0.5
  %v185 = vmul.f32 %v121, 0.5
  %v186 = vmul.f32 %v122, 0.5
  %v187 = vmul.f32 %v123, 0.5
  %v188 = vmul.f32 %v124, 0.5
  %v189 = vmul.f32 %v125, 0.5
  %v190 = vmul.f32 %v126, 0.5
  %v191 = vmul.f32 %v127, 0.5
  %v192 = vmul.f32 %v128, 0.5
  %v193 = vmul.f32 %v129, 0.5
  %v194 = vmul.f32 %v130, 0.5
  %v195 = vmul.f32 %v131, 0.5
  %v196 = vmul.f32 %v132, 0.5
  %v197 = vmul.f32 %v133, 0.5
  %v198 = vmul.f32 %v134, 0.5
  %v199 = vmul.f32 %v135, 0.5
  %v200 = vmul.f32 %v136, 0.5
  %v201 = vmul.f32 %v137, 0.5
  %v202 = vmul.f32 %v138, 0.5
  %v203 = vmul.f32 %v139, 0.5
  %v204 = vmul.f32 %v140, 0.5
  %v205 = vmul.f32 %v141, 0.5
  %v206 = vmul.f32 %v142, 0.5
  %v207 = vmul.f32 %v143, 0.5
  %v208 = vmul.f32 %v144, 0.5
  %v209 = vmul.f32 %v145, 1.442695
  %v210 = vpow.pop %v209
  %v211 = vmul.f32 %v146, 1.442695
  %v212 = vpow.pop %v211
  %v213 = vmul.f32 %v147, 1.442695
  %v214 = vpow.pop %v213
  %v215 = vmul.f32 %v148, 1.442695
  %v216 = vpow.pop %v215
  %v217 = vmul.f32 %v149, 1.442695
  %v218 = vpow.pop %v217
  %v219 = vmul.f32 %v150, 1.442695
  %v220 = vpow.pop %v219
  %v221 = vmul.f32 %v151, 1.442695
  %v222 = vpow.pop %v221
  %v223 = vmul.f32 %v152, 1.442695
  %v224 = vpow.pop %v223
  %v225 = vmul.f32 %v153, 1.442695
  %v226 = vpow.pop %v225
  %v227 = vmul.f32 %v154, 1.442695
  %v228 = vpow.pop %v227
  %v229 = vmul.f32 %v155, 1.442695
  %v230 = vpow.pop %v229
  %v231 = vmul.f32 %v156, 1.442695
  %v232 = vpow.pop %v231
  %v233 = vmul.f32 %v157, 1.442695
  %v234 = vpow.pop %v233
  %v235 = vmul.f32 %v158, 1.442695
  %v236 = vpow.pop %v235
  %v237 = vmul.f32 %v159, 1.442695
  %v238 = vpow.pop %v237
  %v239 = vmul.f32 %v160, 1.442695
  %v240 = vpow.pop %v239
  %v241 = vmul.f32 %v161, 1.442695
  %v242 = vpow.pop %v241
  %v243 = vmul.f32 %v162, 1.442695
  %v244 = vpow.pop %v243
  %v245 = vmul.f32 %v163, 1.442695
  %v246 = vpow.pop %v245
  %v247 = vmul.f32 %v164, 1.442695
  %v248 = vpow.pop %v247
  %v249 = vmul.f32 %v165, 1.442695
  %v250 = vpow.pop %v249
  %v251 = vmul.f32 %v166, 1.442695
  %v252 = vpow.pop %v251
  %v253 = vmul.f32 %v167, 1.442695
  %v254 = vpow.pop %v253
  %v255 = vmul.f32 %v168, 1.442695
  %v256 = vpow.pop %v255
  %v257 = vmul.f32 %v169, 1.442695
  %v258 = vpow.pop %v257
  %v259 = vmul.f32 %v170, 1.442695
  %v260 = vpow.pop %v259
  %v261 = vmul.f32 %v171, 1.442695
  %v262 = vpow.pop %v261
  %v263 = vmul.f32 %v172, 1.442695
  %v264 = vpow.pop %v263
  %v265 = vmul.f32 %v173, 1.442695
  %v266 = vpow.pop %v265
  %v267 = vmul.f32 %v174, 1.442695
  %v268 = vpow.pop %v267
  %v269 = vmul.f32 %v175, 1.442695
  %v270 = vpow.pop %v269
  %v271 = vmul.f32 %v176, 1.442695
  %v272 = vpow.pop %v271
  %v273 = vmul.f32 %v177, 1.442695
  %v274 = vpow.pop %v273
  %v275 = vmul.f32 %v178, 1.442695
  %v276 = vpow.pop %v275
  %v277 = vmul.f32 %v179, 1.442695
  %v278 = vpow.pop %v277
  %v279 = vmul.f32 %v180, 1.442695
  %v280 = vpow.pop %v279
  %v281 = vmul.f32 %v181, 1.442695
  %v282 = vpow.pop %v281
  %v283 = vmul.f32 %v182, 1.442695
  %v284 = vpow.pop %v283
  %v285 = vmul.f32 %v183, 1.442695
  %v286 = vpow.pop %v285
  %v287 = vmul.f32 %v184, 1.442695
  %v288 = vpow.pop %v287
  %v289 = vmul.f32 %v185, 1.442695
  %v290 = vpow.pop %v289
  %v291 = vmul.f32 %v186, 1.442695
  %v292 = vpow.pop %v291
  %v293 = vmul.f32 %v187, 1.442695
  %v294 = vpow.pop %v293
  %v295 = vmul.f32 %v188, 1.442695
  %v296 = vpow.pop %v295
  %v297 = vmul.f32 %v189, 1.442695
  %v298 = vpow.pop %v297
  %v299 = vmul.f32 %v190, 1.442695
  %v300 = vpow.pop %v299
  %v301 = vmul.f32 %v191, 1.442695
  %v302 = vpow.pop %v301
  %v303 = vmul.f32 %v192, 1.442695
  %v304 = vpow.pop %v303
  %v305 = vmul.f32 %v193, 1.442695
  %v306 = vpow.pop %v305
  %v307 = vmul.f32 %v194, 1.442695
  %v308 = vpow.pop %v307
  %v309 = vmul.f32 %v195, 1.442695
  %v310 = vpow.pop %v309
  %v311 = vmul.f32 %v196, 1.442695
  %v312 = vpow.pop %v311
  %v313 = vmul.f32 %v197, 1.442695
  %v314 = vpow.pop %v313
  %v315 = vmul.f32 %v198, 1.442695
  %v316 = vpow.pop %v315
  %v317 = vmul.f32 %v199, 1.442695
  %v318 = vpow.pop %v317
  %v319 = vmul.f32 %v200, 1.442695
  %v320 = vpow.pop %v319
  %v321 = vmul.f32 %v201, 1.442695
  %v322 = vpow.pop %v321
  %v323 = vmul.f32 %v202, 1.442695
  %v324 = vpow.pop %v323
  %v325 = vmul.f32 %v203, 1.442695
  %v326 = vpow.pop %v325
  %v327 = vmul.f32 %v204, 1.442695
  %v328 = vpow.pop %v327
  %v329 = vmul.f32 %v205, 1.442695
  %v330 = vpow.pop %v329
  %v331 = vmul.f32 %v206, 1.442695
  %v332 = vpow.pop %v331
  %v333 = vmul.f32 %v207, 1.442695
  %v334 = vpow.pop %v333
  %v335 = vmul.f32 %v208, 1.442695
  %v336 = vpow.pop %v335
  %v337 = vld [vmem:[%s3] sm:$0xff]
  %v338 = vld [vmem:[%s3 + $0x8] sm:$0xff]
  %v339 = vld [vmem:[%s3 + $0x10] sm:$0xff]
  %v340 = vld [vmem:[%s3 + $0x18] sm:$0xff]
  %v341 = vld [vmem:[%s3 + $0x20] sm:$0xff]
  %v342 = vld [vmem:[%s3 + $0x28] sm:$0xff]
  %v343 = vld [vmem:[%s3 + $0x30] sm:$0xff]
  %v344 = vld [vmem:[%s3 + $0x38] sm:$0xff]
  %v345 = vld [vmem:[%s3 + $0x40] sm:$0xff]
  %v346 = vld [vmem:[%s3 + $0x48] sm:$0xff]
  %v347 = vld [vmem:[%s3 + $0x50] sm:$0xff]
  %v348 = vld [vmem:[%s3 + $0x58] sm:$0xff]
  %v349 = vld [vmem:[%s3 + $0x60] sm:$0xff]
  %v350 = vld [vmem:[%s3 + $0x68] sm:$0xff]
  %v351 = vld [vmem:[%s3 + $0x70] sm:$0xff]
  %v352 = vld [vmem:[%s3 + $0x78] sm:$0xff]
  %v353 = vld [vmem:[%s3 + $0x80] sm:$0xff]
  %v354 = vld [vmem:[%s3 + $0x88] sm:$0xff]
  %v355 = vld [vmem:[%s3 + $0x90] sm:$0xff]
  %v356 = vld [vmem:[%s3 + $0x98] sm:$0xff]
  %v357 = vld [vmem:[%s3 + $0xa0] sm:$0xff]
  %v358 = vld [vmem:[%s3 + $0xa8] sm:$0xff]
  %v359 = vld [vmem:[%s3 + $0xb0] sm:$0xff]
  %v360 = vld [vmem:[%s3 + $0xb8] sm:$0xff]
  %v361 = vld [vmem:[%s3 + $0xc0] sm:$0xff]
  %v362 = vld [vmem:[%s3 + $0xc8] sm:$0xff]
  %v363 = vld [vmem:[%s3 + $0xd0] sm:$0xff]
  %v364 = vld [vmem:[%s3 + $0xd8] sm:$0xff]
  %v365 = vld [vmem:[%s3 + $0xe0] sm:$0xff]
  %v366 = vld [vmem:[%s3 + $0xe8] sm:$0xff]
  %v367 = vld [vmem:[%s3 + $0xf0] sm:$0xff]
  %v368 = vld [vmem:[%s3 + $0xf8] sm:$0xff]
  %v369 = vld [vmem:[%s3 + $0x100] sm:$0xff]
  %v370 = vld [vmem:[%s3 + $0x108] sm:$0xff]
  %v371 = vld [vmem:[%s3 + $0x110] sm:$0xff]
  %v372 = vld [vmem:[%s3 + $0x118] sm:$0xff]
  %v373 = vld [vmem:[%s3 + $0x120] sm:$0xff]
  %v374 = vld [vmem:[%s3 + $0x128] sm:$0xff]
  %v375 = vld [vmem:[%s3 + $0x130] sm:$0xff]
  %v376 = vld [vmem:[%s3 + $0x138] sm:$0xff]
  %v377 = vld [vmem:[%s3 + $0x140] sm:$0xff]
  %v378 = vld [vmem:[%s3 + $0x148] sm:$0xff]
  %v379 = vld [vmem:[%s3 + $0x150] sm:$0xff]
  %v380 = vld [vmem:[%s3 + $0x158] sm:$0xff]
  %v381 = vld [vmem:[%s3 + $0x160] sm:$0xff]
  %v382 = vld [vmem:[%s3 + $0x168] sm:$0xff]
  %v383 = vld [vmem:[%s3 + $0x170] sm:$0xff]
  %v384 = vld [vmem:[%s3 + $0x178] sm:$0xff]
  %v385 = vld [vmem:[%s3 + $0x180] sm:$0xff]
  %v386 = vld [vmem:[%s3 + $0x188] sm:$0xff]
  %v387 = vld [vmem:[%s3 + $0x190] sm:$0xff]
  %v388 = vld [vmem:[%s3 + $0x198] sm:$0xff]
  %v389 = vld [vmem:[%s3 + $0x1a0] sm:$0xff]
  %v390 = vld [vmem:[%s3 + $0x1a8] sm:$0xff]
  %v391 = vld [vmem:[%s3 + $0x1b0] sm:$0xff]
  %v392 = vld [vmem:[%s3 + $0x1b8] sm:$0xff]
  %v393 = vld [vmem:[%s3 + $0x1c0] sm:$0xff]
  %v394 = vld [vmem:[%s3 + $0x1c8] sm:$0xff]
  %v395 = vld [vmem:[%s3 + $0x1d0] sm:$0xff]
  %v396 = vld [vmem:[%s3 + $0x1d8] sm:$0xff]
  %v397 = vld [vmem:[%s3 + $0x1e0] sm:$0xff]
  %v398 = vld [vmem:[%s3 + $0x1e8] sm:$0xff]
  %v399 = vld [vmem:[%s3 + $0x1f0] sm:$0xff]
  %v400 = vld [vmem:[%s3 + $0x1f8] sm:$0xff]
  %v401 = vmul.f32 %v210, %v337
  %v402 = vmul.f32 %v212, %v338
  %v403 = vmul.f32 %v214, %v339
  %v404 = vmul.f32 %v216, %v340
  %v405 = vmul.f32 %v218, %v341
  %v406 = vmul.f32 %v220, %v342
  %v407 = vmul.f32 %v222, %v343
  %v408 = vmul.f32 %v224, %v344
  %v409 = vmul.f32 %v226, %v345
  %v410 = vmul.f32 %v228, %v346
  %v411 = vmul.f32 %v230, %v347
  %v412 = vmul.f32 %v232, %v348
  %v413 = vmul.f32 %v234, %v349
  %v414 = vmul.f32 %v236, %v350
  %v415 = vmul.f32 %v238, %v351
  %v416 = vmul.f32 %v240, %v352
  %v417 = vmul.f32 %v242, %v353
  %v418 = vmul.f32 %v244, %v354
  %v419 = vmul.f32 %v246, %v355
  %v420 = vmul.f32 %v248, %v356
  %v421 = vmul.f32 %v250, %v357
  %v422 = vmul.f32 %v252, %v358
  %v423 = vmul.f32 %v254, %v359
  %v424 = vmul.f32 %v256, %v360
  %v425 = vmul.f32 %v258, %v361
  %v426 = vmul.f32 %v260, %v362
  %v427 = vmul.f32 %v262, %v363
  %v428 = vmul.f32 %v264, %v364
  %v429 = vmul.f32 %v266, %v365
  %v430 = vmul.f32 %v268, %v366
  %v431 = vmul.f32 %v270, %v367
  %v432 = vmul.f32 %v272, %v368
  %v433 = vmul.f32 %v274, %v369
  %v434 = vmul.f32 %v276, %v370
  %v435 = vmul.f32 %v278, %v371
  %v436 = vmul.f32 %v280, %v372
  %v437 = vmul.f32 %v282, %v373
  %v438 = vmul.f32 %v284, %v374
  %v439 = vmul.f32 %v286, %v375
  %v440 = vmul.f32 %v288, %v376
  %v441 = vmul.f32 %v290, %v377
  %v442 = vmul.f32 %v292, %v378
  %v443 = vmul.f32 %v294, %v379
  %v444 = vmul.f32 %v296, %v380
  %v445 = vmul.f32 %v298, %v381
  %v446 = vmul.f32 %v300, %v382
  %v447 = vmul.f32 %v302, %v383
  %v448 = vmul.f32 %v304, %v384
  %v449 = vmul.f32 %v306, %v385
  %v450 = vmul.f32 %v308, %v386
  %v451 = vmul.f32 %v310, %v387
  %v452 = vmul.f32 %v312, %v388
  %v453 = vmul.f32 %v314, %v389
  %v454 = vmul.f32 %v316, %v390
  %v455 = vmul.f32 %v318, %v391
  %v456 = vmul.f32 %v320, %v392
  %v457 = vmul.f32 %v322, %v393
  %v458 = vmul.f32 %v324, %v394
  %v459 = vmul.f32 %v326, %v395
  %v460 = vmul.f32 %v328, %v396
  %v461 = vmul.f32 %v330, %v397
  %v462 = vmul.f32 %v332, %v398
  %v463 = vmul.f32 %v334, %v399
  %v464 = vmul.f32 %v336, %v400
  %v465 = vadd.f32 %v17, %v401
  %v466 = vadd.f32 %v18, %v402
  %v467 = vadd.f32 %v19, %v403
  %v468 = vadd.f32 %v20, %v404
  %v469 = vadd.f32 %v21, %v405
  %v470 = vadd.f32 %v22, %v406
  %v471 = vadd.f32 %v23, %v407
  %v472 = vadd.f32 %v24, %v408
  %v473 = vadd.f32 %v25, %v409
  %v474 = vadd.f32 %v26, %v410
  %v475 = vadd.f32 %v27, %v411
  %v476 = vadd.f32 %v28, %v412
  %v477 = vadd.f32 %v29, %v413
  %v478 = vadd.f32 %v30, %v414
  %v479 = vadd.f32 %v31, %v415
  %v480 = vadd.f32 %v32, %v416
  %v481 = vadd.f32 %v33, %v417
  %v482 = vadd.f32 %v34, %v418
  %v483 = vadd.f32 %v35, %v419
  %v484 = vadd.f32 %v36, %v420
  %v485 = vadd.f32 %v37, %v421
  %v486 = vadd.f32 %v38, %v422
  %v487 = vadd.f32 %v39, %v423
  %v488 = vadd.f32 %v40, %v424
  %v489 = vadd.f32 %v41, %v425
  %v490 = vadd.f32 %v42, %v426
  %v491 = vadd.f32 %v43, %v427
  %v492 = vadd.f32 %v44, %v428
  %v493 = vadd.f32 %v45, %v429
  %v494 = vadd.f32 %v46, %v430
  %v495 = vadd.f32 %v47, %v431
  %v496 = vadd.f32 %v48, %v432
  %v497 = vadd.f32 %v49, %v433
  %v498 = vadd.f32 %v50, %v434
  %v499 = vadd.f32 %v51, %v435
  %v500 = vadd.f32 %v52, %v436
  %v501 = vadd.f32 %v53, %v437
  %v502 = vadd.f32 %v54, %v438
  %v503 = vadd.f32 %v55, %v439
  %v504 = vadd.f32 %v56, %v440
  %v505 = vadd.f32 %v57, %v441
  %v506 = vadd.f32 %v58, %v442
  %v507 = vadd.f32 %v59, %v443
  %v508 = vadd.f32 %v60, %v444
  %v509 = vadd.f32 %v61, %v445
  %v510 = vadd.f32 %v62, %v446
  %v511 = vadd.f32 %v63, %v447
  %v512 = vadd.f32 %v64, %v448
  %v513 = vadd.f32 %v65, %v449
  %v514 = vadd.f32 %v66, %v450
  %v515 = vadd.f32 %v67, %v451
  %v516 = vadd.f32 %v68, %v452
  %v517 = vadd.f32 %v69, %v453
  %v518 = vadd.f32 %v70, %v454
  %v519 = vadd.f32 %v71, %v455
  %v520 = vadd.f32 %v72, %v456
  %v521 = vadd.f32 %v73, %v457
  %v522 = vadd.f32 %v74, %v458
  %v523 = vadd.f32 %v75, %v459
  %v524 = vadd.f32 %v76, %v460
  %v525 = vadd.f32 %v77, %v461
  %v526 = vadd.f32 %v78, %v462
  %v527 = vadd.f32 %v79, %v463
  %v528 = vadd.f32 %v80, %v464
  %v529 = vpack.c.bf16 %v467, %v465
  %v530 = vpack.c.bf16 %v468, %v466
  %v531 = vpack.c.bf16 %v471, %v469
  %v532 = vpack.c.bf16 %v472, %v470
  %v533 = vpack.c.bf16 %v475, %v473
  %v534 = vpack.c.bf16 %v476, %v474
  %v535 = vpack.c.bf16 %v479, %v477
  %v536 = vpack.c.bf16 %v480, %v478
  %v537 = vpack.c.bf16 %v483, %v481
  %v538 = vpack.c.bf16 %v484, %v482
  %v539 = vpack.c.bf16 %v487, %v485
  %v540 = vpack.c.bf16 %v488, %v486
  %v541 = vpack.c.bf16 %v491, %v489
  %v542 = vpack.c.bf16 %v492, %v490
  %v543 = vpack.c.bf16 %v495, %v493
  %v544 = vpack.c.bf16 %v496, %v494
  %v545 = vpack.c.bf16 %v499, %v497
  %v546 = vpack.c.bf16 %v500, %v498
  %v547 = vpack.c.bf16 %v503, %v501
  %v548 = vpack.c.bf16 %v504, %v502
  %v549 = vpack.c.bf16 %v507, %v505
  %v550 = vpack.c.bf16 %v508, %v506
  %v551 = vpack.c.bf16 %v511, %v509
  %v552 = vpack.c.bf16 %v512, %v510
  %v553 = vpack.c.bf16 %v515, %v513
  %v554 = vpack.c.bf16 %v516, %v514
  %v555 = vpack.c.bf16 %v519, %v517
  %v556 = vpack.c.bf16 %v520, %v518
  %v557 = vpack.c.bf16 %v523, %v521
  %v558 = vpack.c.bf16 %v524, %v522
  %v559 = vpack.c.bf16 %v527, %v525
  %v560 = vpack.c.bf16 %v528, %v526
  %v561 = vld [vmem:[%s0] sm:$0xff]
  %v563 = vunpack.c.l.b16 %v561
  %v564 = vunpack.c.h.b16 %v561
  %v565 = vpack.c.b16 %v563, %v563
  %v566 = vpack.c.b16 %v564, %v564
  %569 = vmatprep.subr.bf16.mxu0 %v544
  %570 = vmatpush1.bf16.msra.mxu0 %v543
  %571 = vmatprep.subr.bf16.mxu0 %v542
  %572 = vmatpush1.bf16.msra.mxu0 %v541
  %573 = vmatprep.subr.bf16.mxu0 %v540
  %574 = vmatpush1.bf16.msra.mxu0 %v539
  %575 = vmatprep.subr.bf16.mxu0 %v538
  %576 = vmatpush1.bf16.msra.mxu0 %v537
  %577 = vmatprep.subr.bf16.mxu0 %v536
  %578 = vmatpush1.bf16.msra.mxu0 %v535
  %579 = vmatprep.subr.bf16.mxu0 %v534
  %580 = vmatpush1.bf16.msra.mxu0 %v533
  %581 = vmatprep.subr.bf16.mxu0 %v532
  %582 = vmatpush1.bf16.msra.mxu0 %v531
  %583 = vmatprep.subr.bf16.mxu0 %v530
  %584 = vmatpush1.bf16.msra.mxu0 %v529
  %585 = vmatprep.subr.bf16.mxu0 %v560
  %586 = vmatpush2.bf16.msra.mxu0 %v559
  %587 = vmatprep.subr.bf16.mxu0 %v558
  %588 = vmatpush2.bf16.msra.mxu0 %v557
  %589 = vmatprep.subr.bf16.mxu0 %v556
  %590 = vmatpush2.bf16.msra.mxu0 %v555
  %591 = vmatprep.subr.bf16.mxu0 %v554
  %592 = vmatpush2.bf16.msra.mxu0 %v553
  %593 = vmatprep.subr.bf16.mxu0 %v552
  %594 = vmatpush2.bf16.msra.mxu0 %v551
  %595 = vmatprep.subr.bf16.mxu0 %v550
  %596 = vmatpush2.bf16.msra.mxu0 %v549
  %597 = vmatprep.subr.bf16.mxu0 %v548
  %598 = vmatpush2.bf16.msra.mxu0 %v547
  %599 = vmatprep.subr.bf16.mxu0 %v546
  %600 = vmatpush2.bf16.msra.mxu0 %v545
  %601 = vmatprep.mubr.bf16.mxu0 %v566
  %602 = vmatmul.mubr.bf16.gmra.mxu0 %v565
  %v603 = vpop.f32.mrf.mxu0
  %v604 = vadd.f32 0.0, %v603
  %v605 = vpop.f32.mrf.mxu0
  %v606 = vadd.f32 0.0, %v605
  %v607 = vpop.f32.mrf.mxu0
  %v608 = vpop.f32.mrf.mxu0
  %609 = vdwg.mxu0
  %610 = vst [vmem:[%s4] sm:$0xff] %v604
  %611 = vst [vmem:[%s4 + $0x8] sm:$0xff] %v606
  // Predicated region
  $region18: #{bayesian_lr_forward.1} parent=0 // pred_check
    _
  $region19: #{bayesian_lr_forward.1} parent=0 // pred_check_branch
    %613 = sbr.rel (0) target = $region21
  $region20: #{bayesian_lr_forward.1} parent=0 // pred_region
    _
  $region21: #{bayesian_lr_forward.1} parent=0 // pred_fallthru
    _
  // Predicated region
  $region22: #{bayesian_lr_forward.1} parent=0 // pred_check
    _
  $region23: #{bayesian_lr_forward.1} parent=0 // pred_check_branch
    %615 = sbr.rel (0) target = $region25
  $region24: #{bayesian_lr_forward.1} parent=0 // pred_region
    _
  $region25: #{bayesian_lr_forward.1} parent=0 // pred_fallthru
    _

</llo_original>
